<compile_context>
chip_gen: v7x
topology: tpu7x:2x2x1
jax: 0.10.0
libtpu: 0.0.40
codegen_flags: <defaults>
</compile_context>

<pallas_src>
import jax
import jax.numpy as jnp
import numpy as np
from jax.experimental import pallas as pl
from jax.experimental.pallas import tpu as pltpu


# ---------------------------------------------------------------------------
# Zero-movement path: aliased no-op kernel (output buffer IS the input buffer)
# ---------------------------------------------------------------------------
def _alias_noop_kernel(x_ref, o_ref):
    # Output is aliased onto the input at the XLA buffer level; nothing to
    # read, compute, or write inside the kernel.
    del x_ref, o_ref


def _passthrough(x):
    return pl.pallas_call(
        _alias_noop_kernel,
        out_shape=jax.ShapeDtypeStruct(x.shape, x.dtype),
        in_specs=[pl.BlockSpec(memory_space=pl.ANY)],   # stay in HBM, no DMA
        out_specs=pl.BlockSpec(memory_space=pl.ANY),
        input_output_aliases={0: 0},
        compiler_params=pltpu.CompilerParams(has_side_effects=True),
    )(x)


# ---------------------------------------------------------------------------
# Non-donating fallback: tiled, lane-dense identity copy (HBM-bandwidth bound)
# ---------------------------------------------------------------------------
def _copy_kernel(x_ref, o_ref):
    o_ref[...] = x_ref[...]


def _materialize(x, *, target_block_bytes=2 << 20):
    """Identity-copy the elements of x through a tiled Pallas kernel."""
    n = x.size
    itemsize = x.dtype.itemsize

    # Lane-dense presentation: wide last dim, multiple of 128 (unmasked vst).
    # If the element count has no 128-divisor, keep the natural last dim --
    # full-extent block dims are always legal and avoid a (1, n) masked slab.
    lanes = next((c for c in (2048, 1024, 512, 256, 128) if n % c == 0), None)
    if lanes is not None:
        flat = x.reshape(n // lanes, lanes)
    elif x.ndim >= 2:
        flat = x.reshape(-1, x.shape[-1])
    else:
        flat = x.reshape(1, -1)
    R, L = flat.shape

    # dtype-aware sublane multiple: f32 -> 8, bf16 -> 16, int8/fp8 -> 32.
    sub = 8 * max(1, 4 // itemsize)

    # Row tile targeting ~2 MiB per block: >=1 MiB blocks reach ~85% of HBM
    # roofline and keep the ~0.35 us per-grid-step overhead negligible even at
    # v7x's 3.2 TB/s.  Partial last block is handled by Pallas via cdiv grid.
    rows = max(sub, (target_block_bytes // max(1, L * itemsize)) // sub * sub)
    tb = R if R <= rows else rows
    grid = (pl.cdiv(R, tb),)

    y = pl.pallas_call(
        _copy_kernel,
        out_shape=jax.ShapeDtypeStruct((R, L), flat.dtype),
        grid=grid,
        in_specs=[pl.BlockSpec((tb, L), lambda i: (i, 0))],
        out_specs=pl.BlockSpec((tb, L), lambda i: (i, 0)),
        cost_estimate=pl.CostEstimate(
            flops=0, transcendentals=0, bytes_accessed=2 * n * itemsize),
        compiler_params=pltpu.CompilerParams(
            dimension_semantics=("parallel",),
            # 2 MiB blocks, double-buffered in + out ~= 8 MiB; 32 MiB leaves
            # headroom on every generation (incl. v5e's 16 MiB scoped default
            # and v7x's 64 MiB physical VMEM).
            vmem_limit_bytes=32 * 1024 * 1024,
        ),
    )(flat)
    return y.reshape(x.shape)


# ---------------------------------------------------------------------------
# Module wrapper
# ---------------------------------------------------------------------------
def unsqueeze_module(x, times=1, loc=-1, *, donate_input=True):
    """Reproduces UnsqueezeModule.forward (x: [B, C]).

    unsqueeze is metadata-only, so the default path contributes zero data
    movement (aliased empty-body kernel).  Pass donate_input=False if the
    caller keeps using `x` afterwards -- that path runs a tiled identity copy
    instead of aliasing the buffer.
    """
    out = _passthrough(x) if donate_input else _materialize(x)
    for _ in range(times):
        out = jnp.expand_dims(out, axis=loc)   # metadata-only view change
    return out


if __name__ == "__main__":
    # Module spec: x is [B, C]; defaults times=1, loc=-1 -> output [B, C, 1].
    B, C = 2, 64
    times, loc = 1, -1

    key = jax.random.PRNGKey(0)
    x = jax.random.normal(key, (B, C), dtype=jnp.float32)

    # Independent host-side reference captured BEFORE any buffer aliasing.
    x_host = np.asarray(jax.device_get(x))
    ref = x_host
    for _ in range(times):
        ref = np.expand_dims(ref, axis=loc)

    # Default zero-movement path (aliased no-op kernel).
    out = jax.block_until_ready(unsqueeze_module(x, times=times, loc=loc))
    assert out.shape == (B, C, 1), out.shape
    assert out.dtype == x.dtype
    assert np.array_equal(np.asarray(jax.device_get(out)), ref)

    # Non-donating fallback path (tiled identity-copy kernel).
    x2 = jnp.asarray(x_host)
    out2 = jax.block_until_ready(
        unsqueeze_module(x2, times=times, loc=loc, donate_input=False))
    assert out2.shape == (B, C, 1), out2.shape
    assert out2.dtype == x.dtype
    assert np.array_equal(np.asarray(jax.device_get(out2)), ref)

    print("KERNEL_OK")
</pallas_src>

<mosaic_0001>
module attributes {stable_mosaic.version = 11 : i64} {
  func.func @_alias_noop_kernel(%arg0: memref<2x64xf32, #tpu.memory_space<any>>, %arg1: memref<2x64xf32, #tpu.memory_space<any>>) attributes {dimension_semantics = [], scalar_prefetch = 0 : i64, scratch_operands = 0 : i64, tpu.core_type = #tpu.core_type<tc>} {
    return
  }
}

</mosaic_0001>

<llo_original>
// kernel: tpu_custom_call.1
$region0: #{tpu_custom_call.1}
  #allocation0 [shape = 'u32[]', space=smem, size = 0x4, offset = 0x4, fixed_abs, tag = 'smem constant byte address 0x4 - core index']
  #allocation1 [shape = 'u32[144,128]{1,0:T(1,128)}', space=vmem, size = 0x12000, scoped, tag = 'internal scratch']
  %s0 = inlined_call_operand.hbm [shape: f32[2,64], index: 0, kind: input, shape index: {}, may-alias: {0,1}]
  %s1 = inlined_call_operand.hbm [shape: f32[2,64], index: 1, kind: output, shape index: {}, may-alias: {0,1}]
  %s2 = sld [smem:[#allocation0]]
  $region2: #{tpu_custom_call.1} parent=0
    _
  %s4 = ssub.s32 1, %s2
  %s5 = scalar_select 0, %s4, %s2

</llo_original>
